<compile_context>
chip_gen: v6e
topology: v6e:2x2x1
jax: 0.10.0
libtpu: 0.0.40
codegen_flags: <defaults>
</compile_context>

<pallas_src>
import jax
import jax.numpy as jnp
from jax.experimental import pallas as pl
from jax.experimental.pallas import tpu as pltpu

LANE = 128      # lane width (last-dim tiling granularity)
SUBLANE = 8     # sublane granularity (second-to-last dim)


def _round_up(x, m):
    return ((x + m - 1) // m) * m


def decoder_kernel(x_ref,
                   w1_ref, b1_ref,
                   w2_ref, b2_ref,
                   w3_ref, b3_ref,
                   w4_ref, b4_ref,
                   o_ref):
    x = x_ref[...]

    # ln1 + ReLU
    h = jnp.dot(x, w1_ref[...], preferred_element_type=jnp.float32) + b1_ref[...]
    h = jnp.maximum(h, 0.0)
    # ln2 + ReLU
    h = jnp.dot(h, w2_ref[...], preferred_element_type=jnp.float32) + b2_ref[...]
    h = jnp.maximum(h, 0.0)
    # ln3 + ReLU
    h = jnp.dot(h, w3_ref[...], preferred_element_type=jnp.float32) + b3_ref[...]
    h = jnp.maximum(h, 0.0)
    # ln4 + sigmoid.  sigmoid(x) = 0.5*(tanh(x/2)+1): tanh goes to the EUP
    # (transcendental unit), avoiding the VALU divide of 1/(1+exp(-x)).
    logits = jnp.dot(h, w4_ref[...], preferred_element_type=jnp.float32) + b4_ref[...]
    o_ref[...] = (0.5 * (jnp.tanh(0.5 * logits) + 1.0)).astype(o_ref.dtype)


def decoder_forward(x, params, *, tb=512):
    """Run the fused decoder. `tb` is the batch tile size (rows per grid step)."""
    (w1, b1), (w2, b2), (w3, b3), (w4, b4) = params
    B, in_dim = x.shape
    out_dim = w4.shape[1]                       # 784
    out_pad = _round_up(out_dim, LANE)          # 896 = 7 * 128 (lane-dense stores)

    # Pad the last layer's columns so the output is lane-dense; extra columns
    # produce sigmoid(0)=0.5 and are sliced away below.
    if out_pad != out_dim:
        w4 = jnp.pad(w4, ((0, 0), (0, out_pad - out_dim)))
        b4 = jnp.pad(b4, ((0, 0), (0, out_pad - out_dim)))

    # Batch tile: multiple of the sublane size, capped at `tb`; pad B up to a
    # whole number of tiles (padded rows are discarded after the call).
    tile_b = min(_round_up(tb, SUBLANE), _round_up(B, SUBLANE))
    bp = _round_up(B, tile_b)
    if bp != B:
        x = jnp.pad(x, ((0, bp - B), (0, 0)))

    grid = (bp // tile_b,)

    # Weights/biases: whole-array, VMEM-resident, DMA'd exactly once.
    resident = pl.BlockSpec(memory_space=pltpu.MemorySpace.VMEM)

    out = pl.pallas_call(
        decoder_kernel,
        out_shape=jax.ShapeDtypeStruct((bp, out_pad), jnp.float32),
        grid=grid,
        in_specs=[
            pl.BlockSpec((tile_b, in_dim), lambda i: (i, 0)),   # x tiles over batch
            resident, resident,                                 # w1, b1
            resident, resident,                                 # w2, b2
            resident, resident,                                 # w3, b3
            resident, resident,                                 # w4, b4 (padded)
        ],
        out_specs=pl.BlockSpec((tile_b, out_pad), lambda i: (i, 0)),
        compiler_params=pltpu.CompilerParams(
            dimension_semantics=("parallel",),   # batch tiles are independent
        ),
    )(x, w1, b1, w2, b2, w3, b3, w4, b4)

    return out[:B, :out_dim]


def init_linear(key, fan_in, fan_out):
    # PyTorch nn.Linear default init: U(-1/sqrt(fan_in), 1/sqrt(fan_in))
    kw, kb = jax.random.split(key)
    bound = 1.0 / jnp.sqrt(float(fan_in))
    # stored as [in, out] so the kernel does x @ W
    w = jax.random.uniform(kw, (fan_in, fan_out), jnp.float32, -bound, bound)
    b = jax.random.uniform(kb, (1, fan_out), jnp.float32, -bound, bound)
    return w, b


def reference_forward(x, params):
    (w1, b1), (w2, b2), (w3, b3), (w4, b4) = params
    h = jax.nn.relu(x @ w1 + b1)
    h = jax.nn.relu(h @ w2 + b2)
    h = jax.nn.relu(h @ w3 + b3)
    return jax.nn.sigmoid(h @ w4 + b4)


if __name__ == "__main__":
    key = jax.random.PRNGKey(0)
    kx, kx2, k1, k2, k3, k4 = jax.random.split(key, 6)

    params = (
        init_linear(k1, 4, 32),
        init_linear(k2, 32, 128),
        init_linear(k3, 128, 256),
        init_linear(k4, 256, 784),
    )

    # Small demo batch; tb=8 forces a multi-step batch grid (exercises the
    # tiling / pipelining / parallel-semantics path at small shapes).
    B = 16
    x = jax.random.normal(kx, (B, 4), jnp.float32)
    out = jax.block_until_ready(decoder_forward(x, params, tb=8))
    ref = reference_forward(x, params)
    assert out.shape == (B, 784)
    assert jnp.allclose(out, ref, atol=1e-5, rtol=1e-5), "mismatch vs. JAX reference (B=16)"

    # Ragged batch (exercises the batch-padding path) with the default tile.
    B2 = 5
    x2 = jax.random.normal(kx2, (B2, 4), jnp.float32)
    out2 = jax.block_until_ready(decoder_forward(x2, params))
    ref2 = reference_forward(x2, params)
    assert out2.shape == (B2, 784)
    assert jnp.allclose(out2, ref2, atol=1e-5, rtol=1e-5), "mismatch vs. JAX reference (B=5)"

    print("KERNEL_OK")
</pallas_src>

<mosaic_0001>
module attributes {stable_mosaic.version = 11 : i64} {
  func.func @decoder_kernel(%arg0: i32, %arg1: memref<8x4xf32, #tpu.memory_space<vmem>>, %arg2: memref<4x32xf32, #tpu.memory_space<vmem>>, %arg3: memref<1x32xf32, #tpu.memory_space<vmem>>, %arg4: memref<32x128xf32, #tpu.memory_space<vmem>>, %arg5: memref<1x128xf32, #tpu.memory_space<vmem>>, %arg6: memref<128x256xf32, #tpu.memory_space<vmem>>, %arg7: memref<1x256xf32, #tpu.memory_space<vmem>>, %arg8: memref<256x896xf32, #tpu.memory_space<vmem>>, %arg9: memref<1x896xf32, #tpu.memory_space<vmem>>, %arg10: memref<8x896xf32, #tpu.memory_space<vmem>>) attributes {dimension_semantics = [#tpu.dimension_semantics<parallel>], iteration_bounds = array<i64: 2>, scalar_prefetch = 0 : i64, scratch_operands = 0 : i64, tpu.core_type = #tpu.core_type<tc>, window_params = [{transform_indices = @transform_0, window_bounds = array<i64: 8, 4>}, {pipeline_mode = #tpu.pipeline_mode<synchronous>, transform_indices = @transform_1, window_bounds = array<i64: 4, 32>}, {pipeline_mode = #tpu.pipeline_mode<synchronous>, transform_indices = @transform_2, window_bounds = array<i64: 1, 32>}, {pipeline_mode = #tpu.pipeline_mode<synchronous>, transform_indices = @transform_3, window_bounds = array<i64: 32, 128>}, {pipeline_mode = #tpu.pipeline_mode<synchronous>, transform_indices = @transform_4, window_bounds = array<i64: 1, 128>}, {pipeline_mode = #tpu.pipeline_mode<synchronous>, transform_indices = @transform_5, window_bounds = array<i64: 128, 256>}, {pipeline_mode = #tpu.pipeline_mode<synchronous>, transform_indices = @transform_6, window_bounds = array<i64: 1, 256>}, {pipeline_mode = #tpu.pipeline_mode<synchronous>, transform_indices = @transform_7, window_bounds = array<i64: 256, 896>}, {pipeline_mode = #tpu.pipeline_mode<synchronous>, transform_indices = @transform_8, window_bounds = array<i64: 1, 896>}, {transform_indices = @transform_9, window_bounds = array<i64: 8, 896>}]} {
    %c0 = arith.constant 0 : index
    %c0_0 = arith.constant 0 : index
    %0 = vector.load %arg1[%c0, %c0_0] : memref<8x4xf32, #tpu.memory_space<vmem>>, vector<8x4xf32>
    %c0_1 = arith.constant 0 : index
    %c0_2 = arith.constant 0 : index
    %1 = vector.load %arg2[%c0_1, %c0_2] : memref<4x32xf32, #tpu.memory_space<vmem>>, vector<4x32xf32>
    %cst = arith.constant dense<0.000000e+00> : vector<8x32xf32>
    %2 = tpu.matmul %0, %1, %cst {dimension_numbers = #tpu.dot_dimension_numbers<[1], [0], [0], [1], [0, 0, 1, 1], [], []>} : vector<8x4xf32>, vector<4x32xf32>, vector<8x32xf32> -> vector<8x32xf32>
    %c0_3 = arith.constant 0 : index
    %c0_4 = arith.constant 0 : index
    %3 = vector.load %arg3[%c0_3, %c0_4] : memref<1x32xf32, #tpu.memory_space<vmem>>, vector<1x32xf32>
    %4 = vector.broadcast %3 : vector<1x32xf32> to vector<8x32xf32>
    %5 = arith.addf %2, %4 : vector<8x32xf32>
    %cst_5 = arith.constant 0.000000e+00 : f32
    %6 = vector.broadcast %cst_5 : f32 to vector<8x32xf32>
    %7 = arith.maximumf %5, %6 : vector<8x32xf32>
    %c0_6 = arith.constant 0 : index
    %c0_7 = arith.constant 0 : index
    %8 = vector.load %arg4[%c0_6, %c0_7] : memref<32x128xf32, #tpu.memory_space<vmem>>, vector<32x128xf32>
    %cst_8 = arith.constant dense<0.000000e+00> : vector<8x128xf32>
    %9 = tpu.matmul %7, %8, %cst_8 {dimension_numbers = #tpu.dot_dimension_numbers<[1], [0], [0], [1], [0, 0, 1, 1], [], []>} : vector<8x32xf32>, vector<32x128xf32>, vector<8x128xf32> -> vector<8x128xf32>
    %c0_9 = arith.constant 0 : index
    %c0_10 = arith.constant 0 : index
    %10 = vector.load %arg5[%c0_9, %c0_10] : memref<1x128xf32, #tpu.memory_space<vmem>>, vector<1x128xf32>
    %11 = vector.broadcast %10 : vector<1x128xf32> to vector<8x128xf32>
    %12 = arith.addf %9, %11 : vector<8x128xf32>
    %cst_11 = arith.constant 0.000000e+00 : f32
    %13 = vector.broadcast %cst_11 : f32 to vector<8x128xf32>
    %14 = arith.maximumf %12, %13 : vector<8x128xf32>
    %c0_12 = arith.constant 0 : index
    %c0_13 = arith.constant 0 : index
    %15 = vector.load %arg6[%c0_12, %c0_13] : memref<128x256xf32, #tpu.memory_space<vmem>>, vector<128x256xf32>
    %cst_14 = arith.constant dense<0.000000e+00> : vector<8x256xf32>
    %16 = tpu.matmul %14, %15, %cst_14 {dimension_numbers = #tpu.dot_dimension_numbers<[1], [0], [0], [1], [0, 0, 1, 1], [], []>} : vector<8x128xf32>, vector<128x256xf32>, vector<8x256xf32> -> vector<8x256xf32>
    %c0_15 = arith.constant 0 : index
    %c0_16 = arith.constant 0 : index
    %17 = vector.load %arg7[%c0_15, %c0_16] : memref<1x256xf32, #tpu.memory_space<vmem>>, vector<1x256xf32>
    %18 = vector.broadcast %17 : vector<1x256xf32> to vector<8x256xf32>
    %19 = arith.addf %16, %18 : vector<8x256xf32>
    %cst_17 = arith.constant 0.000000e+00 : f32
    %20 = vector.broadcast %cst_17 : f32 to vector<8x256xf32>
    %21 = arith.maximumf %19, %20 : vector<8x256xf32>
    %c0_18 = arith.constant 0 : index
    %c0_19 = arith.constant 0 : index
    %22 = vector.load %arg8[%c0_18, %c0_19] : memref<256x896xf32, #tpu.memory_space<vmem>>, vector<256x896xf32>
    %cst_20 = arith.constant dense<0.000000e+00> : vector<8x896xf32>
    %23 = tpu.matmul %21, %22, %cst_20 {dimension_numbers = #tpu.dot_dimension_numbers<[1], [0], [0], [1], [0, 0, 1, 1], [], []>} : vector<8x256xf32>, vector<256x896xf32>, vector<8x896xf32> -> vector<8x896xf32>
    %c0_21 = arith.constant 0 : index
    %c0_22 = arith.constant 0 : index
    %24 = vector.load %arg9[%c0_21, %c0_22] : memref<1x896xf32, #tpu.memory_space<vmem>>, vector<1x896xf32>
    %25 = vector.broadcast %24 : vector<1x896xf32> to vector<8x896xf32>
    %26 = arith.addf %23, %25 : vector<8x896xf32>
    %cst_23 = arith.constant 5.000000e-01 : f32
    %27 = vector.broadcast %cst_23 : f32 to vector<8x896xf32>
    %28 = arith.mulf %27, %26 : vector<8x896xf32>
    %29 = math.tanh %28 : vector<8x896xf32>
    %cst_24 = arith.constant 1.000000e+00 : f32
    %30 = vector.broadcast %cst_24 : f32 to vector<8x896xf32>
    %31 = arith.addf %29, %30 : vector<8x896xf32>
    %cst_25 = arith.constant 5.000000e-01 : f32
    %32 = vector.broadcast %cst_25 : f32 to vector<8x896xf32>
    %33 = arith.mulf %32, %31 : vector<8x896xf32>
    %c0_26 = arith.constant 0 : index
    %c0_27 = arith.constant 0 : index
    %34 = vector.load %arg10[%c0_26, %c0_27] : memref<8x896xf32, #tpu.memory_space<vmem>>, vector<8x896xf32>
    tpu.vector_store %arg10[%c0_26, %c0_27], %33 {strides = array<i32>} : memref<8x896xf32, #tpu.memory_space<vmem>>, vector<8x896xf32>,
    return
  }
  func.func @transform_0(%arg0: i32) -> (i32, i32) {
    %c0_i32 = arith.constant 0 : i32
    %c0_i32_0 = arith.constant 0 : i32
    return %arg0, %c0_i32 : i32, i32
  }
  func.func @transform_1(%arg0: i32) -> (i32, i32) {
    %c0_i32 = arith.constant 0 : i32
    %c0_i32_0 = arith.constant 0 : i32
    %c0_i32_1 = arith.constant 0 : i32
    return %c0_i32, %c0_i32_0 : i32, i32
  }
  func.func @transform_2(%arg0: i32) -> (i32, i32) {
    %c0_i32 = arith.constant 0 : i32
    %c0_i32_0 = arith.constant 0 : i32
    %c0_i32_1 = arith.constant 0 : i32
    return %c0_i32, %c0_i32_0 : i32, i32
  }
  func.func @transform_3(%arg0: i32) -> (i32, i32) {
    %c0_i32 = arith.constant 0 : i32
    %c0_i32_0 = arith.constant 0 : i32
    %c0_i32_1 = arith.constant 0 : i32
    return %c0_i32, %c0_i32_0 : i32, i32
  }
  func.func @transform_4(%arg0: i32) -> (i32, i32) {
    %c0_i32 = arith.constant 0 : i32
    %c0_i32_0 = arith.constant 0 : i32
    %c0_i32_1 = arith.constant 0 : i32
    return %c0_i32, %c0_i32_0 : i32, i32
  }
  func.func @transform_5(%arg0: i32) -> (i32, i32) {
    %c0_i32 = arith.constant 0 : i32
    %c0_i32_0 = arith.constant 0 : i32
    %c0_i32_1 = arith.constant 0 : i32
    return %c0_i32, %c0_i32_0 : i32, i32
  }
  func.func @transform_6(%arg0: i32) -> (i32, i32) {
    %c0_i32 = arith.constant 0 : i32
    %c0_i32_0 = arith.constant 0 : i32
    %c0_i32_1 = arith.constant 0 : i32
    return %c0_i32, %c0_i32_0 : i32, i32
  }
  func.func @transform_7(%arg0: i32) -> (i32, i32) {
    %c0_i32 = arith.constant 0 : i32
    %c0_i32_0 = arith.constant 0 : i32
    %c0_i32_1 = arith.constant 0 : i32
    return %c0_i32, %c0_i32_0 : i32, i32
  }
  func.func @transform_8(%arg0: i32) -> (i32, i32) {
    %c0_i32 = arith.constant 0 : i32
    %c0_i32_0 = arith.constant 0 : i32
    %c0_i32_1 = arith.constant 0 : i32
    return %c0_i32, %c0_i32_0 : i32, i32
  }
  func.func @transform_9(%arg0: i32) -> (i32, i32) {
    %c0_i32 = arith.constant 0 : i32
    %c0_i32_0 = arith.constant 0 : i32
    return %arg0, %c0_i32 : i32, i32
  }
}

</mosaic_0001>

<llo_original>
// kernel: tpu_custom_call.1
$region0: #{tpu_custom_call.1}
  #allocation0 [shape = 'u32[]', space=smem, size = 0x4, offset = 0x4, fixed_abs, tag = 'smem constant byte address 0x4 - core index']
  #allocation1 [shape = 'u32[144,128]{1,0:T(1,128)}', space=vmem, size = 0x12000, scoped, tag = 'internal scratch']
  %s0 = inlined_call_operand.vmem [shape: f32[16,4], index: 0, kind: input, shape index: {}]
  %s1 = inlined_call_operand.vmem [shape: f32[4,32], index: 1, kind: input, shape index: {}]
  %s2 = inlined_call_operand.vmem [shape: f32[1,32], index: 2, kind: input, shape index: {}]
  %s3 = inlined_call_operand.hbm [shape: f32[32,128], index: 3, kind: input, shape index: {}]
  %s4 = inlined_call_operand.vmem [shape: f32[1,128], index: 4, kind: input, shape index: {}]
  %s5 = inlined_call_operand.hbm [shape: f32[128,256], index: 5, kind: input, shape index: {}]
  %s6 = inlined_call_operand.vmem [shape: f32[1,256], index: 6, kind: input, shape index: {}]
  %s7 = inlined_call_operand.hbm [shape: f32[256,896], index: 7, kind: input, shape index: {}]
  %s8 = inlined_call_operand.vmem [shape: f32[1,896], index: 8, kind: input, shape index: {}]
  %s9 = inlined_call_operand.hbm [shape: f32[16,896], index: 9, kind: output, shape index: {}]
  %s10 = sld [smem:[#allocation0]]
  $region81: #{tpu_custom_call.1} parent=0
    _
  %s12 = ssub.s32 1, %s10
  %s13 = scalar_select 0, %s12, %s10
  $region1: #{tpu_custom_call.1} parent=0
    #allocation2 [shape = 'u8[16384]{0}', space=vmem, size = 0x4000, scoped, tag = 'input window, operand 3, single buffered']
    #allocation3 [shape = 's32[2]{0}', space=sflag, size = 0x8, scoped, tag = 'scoped memory for tpu_custom_call.1']
    #allocation4 [shape = 's32[2]{0}', space=sflag, size = 0x8, scoped, tag = 'scoped memory for tpu_custom_call.1']
    #allocation5 [shape = 'u8[131072]{0}', space=vmem, size = 0x20000, scoped, tag = 'input window, operand 5, single buffered']
    #allocation6 [shape = 's32[1]{0}', space=sflag, size = 0x4, scoped, tag = 'scoped memory for tpu_custom_call.1']
    #allocation7 [shape = 'u8[917504]{0}', space=vmem, size = 0xe0000, scoped, tag = 'input window, operand 7, single buffered']
    #allocation8 [shape = 'u8[57344]{0}', space=vmem, size = 0xe000, scoped, tag = 'output window, operand 0']
    %14 = vsyncpa [#allocation3], 0
    %15 = vsyncpa [#allocation6], 0
    %16 = vsyncpa [#allocation4], 0
    %s17 = scalar_lea.sflag [#allocation4], 1
    %18 = vsyncpa %s17, 0
    loop: start=0, step=1, limit=4
    $region2: #{tpu_custom_call.1} parent=1 // loop_pre_header
      _
    $region3: #{tpu_custom_call.1} parent=1 // loop_header
      %s20 = sphi 0, %s24
      %p21 = scmp.ge.s32.totalorder %s20, 4
      %s30 = sphi 0, %s32
      %s33 = sphi 0, %s30
      %s34 = sphi 0, %s33
      %s50 = sphi 0, %s34
      %s54 = sphi 0, %s54
      %s56 = sphi 0, %s54
      %s57 = sphi 0, %s56
      %s71 = sphi 0, %s57
      %s75 = sphi 0, %s75
      %s77 = sphi 0, %s75
      %s78 = sphi 0, %s77
      %s92 = sphi 0, %s78
      %s96 = sphi 0, %s96
      %s98 = sphi 0, %s96
      %s99 = sphi 0, %s98
      %s113 = sphi 0, %s99
      %s117 = sphi 0, %s117
      %s119 = sphi 0, %s117
      %s120 = sphi 0, %s119
      %s134 = sphi 0, %s120
      %s138 = sphi 0, %s138
      %s140 = sphi 0, %s138
      %s141 = sphi 0, %s140
      %s155 = sphi 0, %s141
      %s159 = sphi 0, %s159
      %s161 = sphi 0, %s159
      %s162 = sphi 0, %s161
      %s176 = sphi 0, %s162
      %s180 = sphi 0, %s180
      %s182 = sphi 0, %s180
      %s183 = sphi 0, %s182
      %s197 = sphi 0, %s183
      %s201 = sphi 0, %s201
      %s203 = sphi 0, %s201
      %s204 = sphi 0, %s203
      %s218 = sphi 0, %s204
      %s224 = sphi 0, %s226
      %s227 = sphi 0, %s224
      %s228 = sphi 0, %s227
      %s244 = sphi 0, %s228
    $region4: #{tpu_custom_call.1} parent=1 // loop_header_branch
      %23 = sbr.rel (%p21) target = $region8
    $region5: #{tpu_custom_call.1} parent=1 // loop_body
      %s25 = ssub.s32 %s20, 1
      %s26 = ssub.s32 %s20, 2
      %s27 = sadd.s32 %s20, 1
      %s28 = ssub.s32 %s20, %s27
      %p29 = scmp.eq.s32.totalorder %s28, 0
      %s31 = sadd.s32 %s30, 1
      %s32 = scalar_select %p29, %s30, %s31
      %p35 = pneg %p29
      %p36 = scmp.eq.s32.totalorder %s20, 1
      %p37 = por %p35, %p36
      %p38 = scmp.ne.s32.totalorder %s30, %s33
      %p39 = scmp.eq.s32.totalorder %s20, 0
      %p40 = por %p38, %p39
      %p41 = scmp.ne.s32.totalorder %s30, %s33
      %p42 = scmp.eq.s32.totalorder %s25, 1
      %p43 = por %p41, %p42
      %p44 = scmp.ne.s32.totalorder %s33, %s34
      %p45 = scmp.eq.s32.totalorder %s25, 0
      %p46 = por %p44, %p45
      %p47 = scmp.ne.s32.totalorder %s33, %s34
      %p48 = scmp.eq.s32.totalorder %s26, 1
      %p49 = por %p47, %p48
      %p51 = scmp.ne.s32.totalorder %s34, %s50
      %p52 = scmp.eq.s32.totalorder %s26, 0
      %p53 = por %p51, %p52
      %s55 = sadd.s32 %s54, 1
      %p58 = scmp.eq.s32.totalorder %s20, 1
      %p59 = scmp.ne.s32.totalorder %s54, %s56
      %p60 = scmp.eq.s32.totalorder %s20, 0
      %p61 = por %p59, %p60
      %p62 = scmp.ne.s32.totalorder %s54, %s56
      %p63 = scmp.eq.s32.totalorder %s25, 1
      %p64 = por %p62, %p63
      %p65 = scmp.ne.s32.totalorder %s56, %s57
      %p66 = scmp.eq.s32.totalorder %s25, 0
      %p67 = por %p65, %p66
      %p68 = scmp.ne.s32.totalorder %s56, %s57
      %p69 = scmp.eq.s32.totalorder %s26, 1
      %p70 = por %p68, %p69
      %p72 = scmp.ne.s32.totalorder %s57, %s71
      %p73 = scmp.eq.s32.totalorder %s26, 0
      %p74 = por %p72, %p73
      %s76 = sadd.s32 %s75, 1
      %p79 = scmp.eq.s32.totalorder %s20, 1
      %p80 = scmp.ne.s32.totalorder %s75, %s77
      %p81 = scmp.eq.s32.totalorder %s20, 0
      %p82 = por %p80, %p81
      %p83 = scmp.ne.s32.totalorder %s75, %s77
      %p84 = scmp.eq.s32.totalorder %s25, 1
      %p85 = por %p83, %p84
      %p86 = scmp.ne.s32.totalorder %s77, %s78
      %p87 = scmp.eq.s32.totalorder %s25, 0
      %p88 = por %p86, %p87
      %p89 = scmp.ne.s32.totalorder %s77, %s78
      %p90 = scmp.eq.s32.totalorder %s26, 1
      %p91 = por %p89, %p90
      %p93 = scmp.ne.s32.totalorder %s78, %s92
      %p94 = scmp.eq.s32.totalorder %s26, 0
      %p95 = por %p93, %p94
      %s97 = sadd.s32 %s96, 1
      %p100 = scmp.eq.s32.totalorder %s20, 1
      %p101 = scmp.ne.s32.totalorder %s96, %s98
      %p102 = scmp.eq.s32.totalorder %s20, 0
      %p103 = por %p101, %p102
      %p104 = scmp.ne.s32.totalorder %s96, %s98
      %p105 = scmp.eq.s32.totalorder %s25, 1
      %p106 = por %p104, %p105
      %p107 = scmp.ne.s32.totalorder %s98, %s99
      %p108 = scmp.eq.s32.totalorder %s25, 0
      %p109 = por %p107, %p108
      %p110 = scmp.ne.s32.totalorder %s98, %s99
      %p111 = scmp.eq.s32.totalorder %s26, 1
      %p112 = por %p110, %p111
      %p114 = scmp.ne.s32.totalorder %s99, %s113
      %p115 = scmp.eq.s32.totalorder %s26, 0
      %p116 = por %p114, %p115
      %s118 = sadd.s32 %s117, 1
      %p121 = scmp.eq.s32.totalorder %s20, 1
      %p122 = scmp.ne.s32.totalorder %s117, %s119
      %p123 = scmp.eq.s32.totalorder %s20, 0
      %p124 = por %p122, %p123
      %p125 = scmp.ne.s32.totalorder %s117, %s119
      %p126 = scmp.eq.s32.totalorder %s25, 1
      %p127 = por %p125, %p126
      %p128 = scmp.ne.s32.totalorder %s119, %s120
      %p129 = scmp.eq.s32.totalorder %s25, 0
      %p130 = por %p128, %p129
      %p131 = scmp.ne.s32.totalorder %s119, %s120
      %p132 = scmp.eq.s32.totalorder %s26, 1
      %p133 = por %p131, %p132
      %p135 = scmp.ne.s32.totalorder %s120, %s134
      %p136 = scmp.eq.s32.totalorder %s26, 0
      %p137 = por %p135, %p136
      %s139 = sadd.s32 %s138, 1
      %p142 = scmp.eq.s32.totalorder %s20, 1
      %p143 = scmp.ne.s32.totalorder %s138, %s140
      %p144 = scmp.eq.s32.totalorder %s20, 0
      %p145 = por %p143, %p144
      %p146 = scmp.ne.s32.totalorder %s138, %s140
      %p147 = scmp.eq.s32.totalorder %s25, 1
      %p148 = por %p146, %p147
      %p149 = scmp.ne.s32.totalorder %s140, %s141
      %p150 = scmp.eq.s32.totalorder %s25, 0
      %p151 = por %p149, %p150
      %p152 = scmp.ne.s32.totalorder %s140, %s141
      %p153 = scmp.eq.s32.totalorder %s26, 1
      %p154 = por %p152, %p153
      %p156 = scmp.ne.s32.totalorder %s141, %s155
      %p157 = scmp.eq.s32.totalorder %s26, 0
      %p158 = por %p156, %p157
      %s160 = sadd.s32 %s159, 1
      %p163 = scmp.eq.s32.totalorder %s20, 1
      %p164 = scmp.ne.s32.totalorder %s159, %s161
      %p165 = scmp.eq.s32.totalorder %s20, 0
      %p166 = por %p164, %p165
      %p167 = scmp.ne.s32.totalorder %s159, %s161
      %p168 = scmp.eq.s32.totalorder %s25, 1
      %p169 = por %p167, %p168
      %p170 = scmp.ne.s32.totalorder %s161, %s162
      %p171 = scmp.eq.s32.totalorder %s25, 0
      %p172 = por %p170, %p171
      %p173 = scmp.ne.s32.totalorder %s161, %s162
      %p174 = scmp.eq.s32.totalorder %s26, 1
      %p175 = por %p173, %p174
      %p177 = scmp.ne.s32.totalorder %s162, %s176
      %p178 = scmp.eq.s32.totalorder %s26, 0
      %p179 = por %p177, %p178
      %s181 = sadd.s32 %s180, 1
      %p184 = scmp.eq.s32.totalorder %s20, 1
      %p185 = scmp.ne.s32.totalorder %s180, %s182
      %p186 = scmp.eq.s32.totalorder %s20, 0
      %p187 = por %p185, %p186
      %p188 = scmp.ne.s32.totalorder %s180, %s182
      %p189 = scmp.eq.s32.totalorder %s25, 1
      %p190 = por %p188, %p189
      %p191 = scmp.ne.s32.totalorder %s182, %s183
      %p192 = scmp.eq.s32.totalorder %s25, 0
      %p193 = por %p191, %p192
      %p194 = scmp.ne.s32.totalorder %s182, %s183
      %p195 = scmp.eq.s32.totalorder %s26, 1
      %p196 = por %p194, %p195
      %p198 = scmp.ne.s32.totalorder %s183, %s197
      %p199 = scmp.eq.s32.totalorder %s26, 0
      %p200 = por %p198, %p199
      %s202 = sadd.s32 %s201, 1
      %p205 = scmp.eq.s32.totalorder %s20, 1
      %p206 = scmp.ne.s32.totalorder %s201, %s203
      %p207 = scmp.eq.s32.totalorder %s20, 0
      %p208 = por %p206, %p207
      %p209 = scmp.ne.s32.totalorder %s201, %s203
      %p210 = scmp.eq.s32.totalorder %s25, 1
      %p211 = por %p209, %p210
      %p212 = scmp.ne.s32.totalorder %s203, %s204
      %p213 = scmp.eq.s32.totalorder %s25, 0
      %p214 = por %p212, %p213
      %p215 = scmp.ne.s32.totalorder %s203, %s204
      %p216 = scmp.eq.s32.totalorder %s26, 1
      %p217 = por %p215, %p216
      %p219 = scmp.ne.s32.totalorder %s204, %s218
      %p220 = scmp.eq.s32.totalorder %s26, 0
      %p221 = por %p219, %p220
      %s222 = ssub.s32 %s20, %s27
      %p223 = scmp.eq.s32.totalorder %s222, 0
      %s225 = sadd.s32 %s224, 1
      %s226 = scalar_select %p223, %s224, %s225
      %p229 = pneg %p223
      %p230 = scmp.eq.s32.totalorder %s20, 1
      %p231 = por %p229, %p230
      %p232 = scmp.ne.s32.totalorder %s224, %s227
      %p233 = scmp.eq.s32.totalorder %s20, 0
      %p234 = por %p232, %p233
      %p235 = scmp.ne.s32.totalorder %s224, %s227
      %p236 = scmp.eq.s32.totalorder %s25, 1
      %p237 = por %p235, %p236
      %p238 = scmp.ne.s32.totalorder %s227, %s228
      %p239 = scmp.eq.s32.totalorder %s25, 0
      %p240 = por %p238, %p239
      %p241 = scmp.ne.s32.totalorder %s227, %s228
      %p242 = scmp.eq.s32.totalorder %s26, 1
      %p243 = por %p241, %p242
      %p245 = scmp.ne.s32.totalorder %s228, %s244
      %p246 = scmp.eq.s32.totalorder %s26, 0
      %p247 = por %p245, %p246
      %p248 = scmp.le.s32.totalorder 1, %s20
      %p249 = scmp.lt.s32.totalorder %s20, 3
      %p250 = pnand %p248, %p249
      %p251 = pneg %p250
      // Predicated region
      $region9: #{tpu_custom_call.1} parent=5 // pred_check
        _
      $region10: #{tpu_custom_call.1} parent=5 // pred_check_branch
        %253 = sbr.rel (%p250) target = $region12
      $region11: #{tpu_custom_call.1} parent=5 // pred_region
        %s254 = ssub.s32 %s20, 1
        // Predicated region
        $region13: #{tpu_custom_call.1} parent=11 // pred_check
          %p255 = pneg %p67
        $region14: #{tpu_custom_call.1} parent=11 // pred_check_branch
          %257 = sbr.rel (%p255) target = $region16
        $region15: #{tpu_custom_call.1} parent=11 // pred_region
          _
        $region16: #{tpu_custom_call.1} parent=11 // pred_fallthru
          _
        // Predicated region
        $region17: #{tpu_custom_call.1} parent=11 // pred_check
          %p258 = pneg %p88
        $region18: #{tpu_custom_call.1} parent=11 // pred_check_branch
          %260 = sbr.rel (%p258) target = $region20
        $region19: #{tpu_custom_call.1} parent=11 // pred_region
          _
        $region20: #{tpu_custom_call.1} parent=11 // pred_fallthru
          _
        // Predicated region
        $region21: #{tpu_custom_call.1} parent=11 // pred_check
          %p261 = pneg %p109
        $region22: #{tpu_custom_call.1} parent=11 // pred_check_branch
          %263 = sbr.rel (%p261) target = $region24
        $region23: #{tpu_custom_call.1} parent=11 // pred_region
          %s265 = ssub.s32 512, 512
          %266 = vsyncadd [#allocation3], %s265
          %s267 = sshll.u32 [#allocation2], 4
          %s268 = int_to_ptr.vmem [resolvable:$true] %s267
          %273 = dma.hbm_to_vmem [thread:$0]  %s3, 512, %s268, [#allocation3], 128, 128, 8
        $region24: #{tpu_custom_call.1} parent=11 // pred_fallthru
          _
        // Predicated region
        $region25: #{tpu_custom_call.1} parent=11 // pred_check
          %p274 = pneg %p130
        $region26: #{tpu_custom_call.1} parent=11 // pred_check_branch
          %276 = sbr.rel (%p274) target = $region28
        $region27: #{tpu_custom_call.1} parent=11 // pred_region
          _
        $region28: #{tpu_custom_call.1} parent=11 // pred_fallthru
          _
        // Predicated region
        $region29: #{tpu_custom_call.1} parent=11 // pred_check
          %p277 = pneg %p151
        $region30: #{tpu_custom_call.1} parent=11 // pred_check_branch
          %279 = sbr.rel (%p277) target = $region32
        $region31: #{tpu_custom_call.1} parent=11 // pred_region
          %s281 = ssub.s32 4096, 4096
          %282 = vsyncadd [#allocation6], %s281
          %s283 = sshll.u32 [#allocation5], 4
          %s284 = int_to_ptr.vmem [resolvable:$true] %s283
          %289 = dma.hbm_to_vmem [thread:$0]  %s5, 4096, %s284, [#allocation6], 256, 256, 16
        $region32: #{tpu_custom_call.1} parent=11 // pred_fallthru
          _
        // Predicated region
        $region33: #{tpu_custom_call.1} parent=11 // pred_check
          %p290 = pneg %p172
        $region34: #{tpu_custom_call.1} parent=11 // pred_check_branch
          %292 = sbr.rel (%p290) target = $region36
        $region35: #{tpu_custom_call.1} parent=11 // pred_region
          _
        $region36: #{tpu_custom_call.1} parent=11 // pred_fallthru
          _
        // Predicated region
        $region37: #{tpu_custom_call.1} parent=11 // pred_check
          %p293 = pneg %p193
        $region38: #{tpu_custom_call.1} parent=11 // pred_check_branch
          %295 = sbr.rel (%p293) target = $region40
        $region39: #{tpu_custom_call.1} parent=11 // pred_region
          %s297 = ssub.s32 28672, 28672
          %298 = vsyncadd [#allocation6], %s297
          %s299 = sshll.u32 [#allocation7], 4
          %s300 = int_to_ptr.vmem [resolvable:$true] %s299
          %305 = dma.hbm_to_vmem [thread:$0]  %s7, 28672, %s300, [#allocation6], 896, 896, 56
        $region40: #{tpu_custom_call.1} parent=11 // pred_fallthru
          _
        // Predicated region
        $region41: #{tpu_custom_call.1} parent=11 // pred_check
          %p306 = pneg %p214
        $region42: #{tpu_custom_call.1} parent=11 // pred_check_branch
          %308 = sbr.rel (%p306) target = $region44
        $region43: #{tpu_custom_call.1} parent=11 // pred_region
          _
        $region44: #{tpu_custom_call.1} parent=11 // pred_fallthru
          _
      $region12: #{tpu_custom_call.1} parent=5 // pred_fallthru
        _
      %p309 = scmp.lt.s32.totalorder %s20, 2
      // Predicated region
      $region45: #{tpu_custom_call.1} parent=5 // pred_check
        %p310 = pneg %p309
      $region46: #{tpu_custom_call.1} parent=5 // pred_check_branch
        %312 = sbr.rel (%p310) target = $region48
      $region47: #{tpu_custom_call.1} parent=5 // pred_region
        // Predicated region
        $region49: #{tpu_custom_call.1} parent=47 // pred_check
          %p313 = pneg %p40
        $region50: #{tpu_custom_call.1} parent=47 // pred_check_branch
          %315 = sbr.rel (%p313) target = $region52
        $region51: #{tpu_custom_call.1} parent=47 // pred_region
          %p316 = scmp.lt.s32.totalorder %s20, 1
          %s317 = scalar_select %p316, %s20, 1
          %s318 = smul.addr %s317, 8
          %s319 = scalar_lea.vmem %s0, %s318
        $region52: #{tpu_custom_call.1} parent=47 // pred_fallthru
          _
      $region48: #{tpu_custom_call.1} parent=5 // pred_fallthru
        _
      %p320 = scmp.le.s32.totalorder 1, %s20
      %p321 = scmp.lt.s32.totalorder %s20, 3
      %p322 = pnand %p320, %p321
      %p323 = pneg %p322
      // Predicated region
      $region53: #{tpu_custom_call.1} parent=5 // pred_check
        _
      $region54: #{tpu_custom_call.1} parent=5 // pred_check_branch
        %325 = sbr.rel (%p322) target = $region56
      $region55: #{tpu_custom_call.1} parent=5 // pred_region
        %s326 = ssub.s32 %s20, 1
        // Predicated region
        $region57: #{tpu_custom_call.1} parent=55 // pred_check
          %p327 = pneg %p109
        $region58: #{tpu_custom_call.1} parent=55 // pred_check_branch
          %329 = sbr.rel (%p327) target = $region60
        $region59: #{tpu_custom_call.1} parent=55 // pred_region
          %330 = dma.done [#allocation3], 512
        $region60: #{tpu_custom_call.1} parent=55 // pred_fallthru
          _
        // Predicated region
        $region61: #{tpu_custom_call.1} parent=55 // pred_check
          %p331 = pneg %p151
        $region62: #{tpu_custom_call.1} parent=55 // pred_check_branch
          %333 = sbr.rel (%p331) target = $region64
        $region63: #{tpu_custom_call.1} parent=55 // pred_region
          %334 = dma.done [#allocation6], 4096
        $region64: #{tpu_custom_call.1} parent=55 // pred_fallthru
          _
        // Predicated region
        $region65: #{tpu_custom_call.1} parent=55 // pred_check
          %p335 = pneg %p193
        $region66: #{tpu_custom_call.1} parent=55 // pred_check_branch
          %337 = sbr.rel (%p335) target = $region68
        $region67: #{tpu_custom_call.1} parent=55 // pred_region
          %338 = dma.done [#allocation6], 28672
        $region68: #{tpu_custom_call.1} parent=55 // pred_fallthru
          _
        %p339 = scmp.lt.s32.totalorder %s25, 1
        %s340 = scalar_select %p339, %s25, 1
        %s341 = smul.addr %s340, 8
        %s342 = scalar_lea.vmem %s0, %s341
        %p343 = pneg %p46
        %p344 = pneg %p43
        %p345 = pneg %p67
        %p346 = pneg %p64
        %p347 = pneg %p88
        %p348 = pneg %p85
        %p349 = pneg %p109
        %p350 = pneg %p106
        %p351 = pneg %p130
        %p352 = pneg %p127
        %p353 = pneg %p151
        %p354 = pneg %p148
        %p355 = pneg %p172
        %p356 = pneg %p169
        %p357 = pneg %p193
        %p358 = pneg %p190
        %p359 = pneg %p214
        %p360 = pneg %p211
        %p361 = pneg %p240
        %p362 = pneg %p237
        %s363 = sand.u32 %s227, 1
        %s364 = scalar_lea.sflag [#allocation4], %s363
        %s365 = sand.u32 %s227, 1
        %s366 = smul.addr %s365, 56
        %s367 = scalar_lea.vmem [#allocation8], %s366
        %p368 = scmp.lt.s32.totalorder %s25, 1
        %s369 = scalar_select %p368, %s25, 1
        %s370 = smul.addr %s369, 8
        %s371 = scalar_lea.vmem %s0, %s370
        %v372 = vld [vmem:[%s371] sm:$0xff]
        %v373 = vld [vmem:[%s1] sm:$0xf]
        %v374 = vld [vmem:[%s2] sm:$0x1]
        %v376 = vlaneseq
        %v377 = vshrl.u32 %v376, 7
        %v378 = vsub.s32 0, %v377
        %v379 = vrot.slane %v374, %v378
        %vm381 = vcmask 31744
        %v383 = vsel %vm381, %v372, 0
        %vm385 = vcmask 1043456
        %v387 = vsel %vm385, %v373, 0
        %389 = vmatprep.subr.mxu0 0.0
        %390 = vmatpush1.msra.mxu0 0.0
        %391 = vmatprep.subr.mxu0 0.0
        %392 = vmatpush1.msra.mxu0 0.0
        %393 = vmatprep.subr.mxu0 0.0
        %394 = vmatpush1.msra.mxu0 0.0
        %395 = vmatprep.subr.mxu0 0.0
        %396 = vmatpush1.msra.mxu0 0.0
        %397 = vmatprep.subr.mxu0 0.0
        %398 = vmatpush1.msra.mxu0 0.0
        %399 = vmatprep.subr.mxu0 0.0
        %400 = vmatpush1.msra.mxu0 0.0
        %401 = vmatprep.subr.mxu0 0.0
        %402 = vmatpush1.msra.mxu0 0.0
        %403 = vmatprep.subr.mxu0 0.0
        %404 = vmatpush1.msra.mxu0 0.0
        %405 = vmatprep.subr.mxu0 0.0
        %406 = vmatpush1.msra.mxu0 0.0
        %407 = vmatprep.subr.mxu0 0.0
        %408 = vmatpush1.msra.mxu0 0.0
        %409 = vmatprep.subr.mxu0 0.0
        %410 = vmatpush1.msra.mxu0 0.0
        %411 = vmatprep.subr.mxu0 0.0
        %412 = vmatpush1.msra.mxu0 0.0
        %413 = vmatprep.subr.mxu0 0.0
        %414 = vmatpush1.msra.mxu0 0.0
        %415 = vmatprep.subr.mxu0 0.0
        %416 = vmatpush1.msra.mxu0 0.0
        %417 = vmatprep.subr.mxu0 0.0
        %418 = vmatpush1.msra.mxu0 0.0
        %419 = vmatprep.subr.mxu0 0.0
        %420 = vmatpush1.msra.mxu0 %v387
        %421 = vmatprep.subr.mxu0 0.0
        %422 = vmatpush2.msra.mxu0 0.0
        %423 = vmatprep.subr.mxu0 0.0
        %424 = vmatpush2.msra.mxu0 0.0
        %425 = vmatprep.subr.mxu0 0.0
        %426 = vmatpush2.msra.mxu0 0.0
        %427 = vmatprep.subr.mxu0 0.0
        %428 = vmatpush2.msra.mxu0 0.0
        %429 = vmatprep.subr.mxu0 0.0
        %430 = vmatpush2.msra.mxu0 0.0
        %431 = vmatprep.subr.mxu0 0.0
        %432 = vmatpush2.msra.mxu0 0.0
        %433 = vmatprep.subr.mxu0 0.0
        %434 = vmatpush2.msra.mxu0 0.0
        %435 = vmatprep.subr.mxu0 0.0
        %436 = vmatpush2.msra.mxu0 0.0
        %437 = vmatprep.subr.mxu0 0.0
        %438 = vmatpush2.msra.mxu0 0.0
        %439 = vmatprep.subr.mxu0 0.0
        %440 = vmatpush2.msra.mxu0 0.0
        %441 = vmatprep.subr.mxu0 0.0
        %442 = vmatpush2.msra.mxu0 0.0
        %443 = vmatprep.subr.mxu0 0.0
        %444 = vmatpush2.msra.mxu0 0.0
        %445 = vmatprep.subr.mxu0 0.0
        %446 = vmatpush2.msra.mxu0 0.0
        %447 = vmatprep.subr.mxu0 0.0
        %448 = vmatpush2.msra.mxu0 0.0
        %449 = vmatprep.subr.mxu0 0.0
        %450 = vmatpush2.msra.mxu0 0.0
        %451 = vmatprep.subr.mxu0 0.0
        %452 = vmatpush2.msra.mxu0 0.0
        %453 = vmatprep.mubr.f32.mxu0 0.0
        %454 = vmatmul.mubr.f32.gmra.mxu0 %v383
        %v455 = vpop.f32.mrf.mxu0
        %v456 = vadd.f32 %v379, %v455
        %v457 = vpop.f32.mrf.mxu0
        %458 = vdwg.mxu0
        %v459 = vmax.f32 %v456, 0.0
        %v460 = vld [vmem:[#allocation2] sm:$0xff]
        %v461 = vld [vmem:[#allocation2 + $0x8] sm:$0xff]
        %v462 = vld [vmem:[#allocation2 + $0x10] sm:$0xff]
        %v463 = vld [vmem:[#allocation2 + $0x18] sm:$0xff]
        %v464 = vld [vmem:[%s4] sm:$0x1]
        %v466 = vlaneseq
        %v467 = vshrl.u32 %v466, 7
        %v468 = vsub.s32 0, %v467
        %v469 = vrot.slane %v464, %v468
        %vm471 = vcmask 261120
        %v473 = vsel %vm471, %v459, 0
        %475 = vmatprep.subr.mxu0 0.0
        %476 = vmatpush1.msra.mxu0 0.0
        %477 = vmatprep.subr.mxu0 0.0
        %478 = vmatpush1.msra.mxu0 0.0
        %479 = vmatprep.subr.mxu0 0.0
        %480 = vmatpush1.msra.mxu0 0.0
        %481 = vmatprep.subr.mxu0 0.0
        %482 = vmatpush1.msra.mxu0 0.0
        %483 = vmatprep.subr.mxu0 0.0
        %484 = vmatpush1.msra.mxu0 0.0
        %485 = vmatprep.subr.mxu0 0.0
        %486 = vmatpush1.msra.mxu0 0.0
        %487 = vmatprep.subr.mxu0 0.0
        %488 = vmatpush1.msra.mxu0 0.0
        %489 = vmatprep.subr.mxu0 0.0
        %490 = vmatpush1.msra.mxu0 0.0
        %491 = vmatprep.subr.mxu0 0.0
        %492 = vmatpush1.msra.mxu0 0.0
        %493 = vmatprep.subr.mxu0 0.0
        %494 = vmatpush1.msra.mxu0 0.0
        %495 = vmatprep.subr.mxu0 0.0
        %496 = vmatpush1.msra.mxu0 0.0
        %497 = vmatprep.subr.mxu0 0.0
        %498 = vmatpush1.msra.mxu0 0.0
        %499 = vmatprep.subr.mxu0 0.0
        %500 = vmatpush1.msra.mxu0 %v463
        %501 = vmatprep.subr.mxu0 0.0
        %502 = vmatpush1.msra.mxu0 %v462
        %503 = vmatprep.subr.mxu0 0.0
        %504 = vmatpush1.msra.mxu0 %v461
        %505 = vmatprep.subr.mxu0 0.0
        %506 = vmatpush1.msra.mxu0 %v460
        %507 = vmatprep.subr.mxu0 0.0
        %508 = vmatpush2.msra.mxu0 0.0
        %509 = vmatprep.subr.mxu0 0.0
        %510 = vmatpush2.msra.mxu0 0.0
        %511 = vmatprep.subr.mxu0 0.0
        %512 = vmatpush2.msra.mxu0 0.0
        %513 = vmatprep.subr.mxu0 0.0
        %514 = vmatpush2.msra.mxu0 0.0
        %515 = vmatprep.subr.mxu0 0.0
        %516 = vmatpush2.msra.mxu0 0.0
        %517 = vmatprep.subr.mxu0 0.0
        %518 = vmatpush2.msra.mxu0 0.0
        %519 = vmatprep.subr.mxu0 0.0
        %520 = vmatpush2.msra.mxu0 0.0
        %521 = vmatprep.subr.mxu0 0.0
        %522 = vmatpush2.msra.mxu0 0.0
        %523 = vmatprep.subr.mxu0 0.0
        %524 = vmatpush2.msra.mxu0 0.0
        %525 = vmatprep.subr.mxu0 0.0
        %526 = vmatpush2.msra.mxu0 0.0
        %527 = vmatprep.subr.mxu0 0.0
        %528 = vmatpush2.msra.mxu0 0.0
        %529 = vmatprep.subr.mxu0 0.0
        %530 = vmatpush2.msra.mxu0 0.0
        %531 = vmatprep.subr.mxu0 0.0
        %532 = vmatpush2.msra.mxu0 0.0
        %533 = vmatprep.subr.mxu0 0.0
        %534 = vmatpush2.msra.mxu0 0.0
        %535 = vmatprep.subr.mxu0 0.0
        %536 = vmatpush2.msra.mxu0 0.0
        %537 = vmatprep.subr.mxu0 0.0
        %538 = vmatpush2.msra.mxu0 0.0
        %539 = vmatprep.mubr.f32.mxu0 0.0
        %540 = vmatmul.mubr.f32.gmra.mxu0 %v473
        %v541 = vpop.f32.mrf.mxu0
        %v542 = vadd.f32 %v469, %v541
        %v543 = vpop.f32.mrf.mxu0
        %544 = vdwg.mxu0
        %v545 = vmax.f32 %v542, 0.0
        %v546 = vld [vmem:[#allocation5] sm:$0xff]
        %v547 = vld [vmem:[#allocation5 + $0x8] sm:$0xff]
        %v548 = vld [vmem:[#allocation5 + $0x10] sm:$0xff]
        %v549 = vld [vmem:[#allocation5 + $0x18] sm:$0xff]
        %v550 = vld [vmem:[#allocation5 + $0x20] sm:$0xff]
        %v551 = vld [vmem:[#allocation5 + $0x28] sm:$0xff]
        %v552 = vld [vmem:[#allocation5 + $0x30] sm:$0xff]
        %v553 = vld [vmem:[#allocation5 + $0x38] sm:$0xff]
        %v554 = vld [vmem:[#allocation5 + $0x40] sm:$0xff]
        %v555 = vld [vmem:[#allocation5 + $0x48] sm:$0xff]
        %v556 = vld [vmem:[#allocation5 + $0x50] sm:$0xff]
        %v557 = vld [vmem:[#allocation5 + $0x58] sm:$0xff]
        %v558 = vld [vmem:[#allocation5 + $0x60] sm:$0xff]
        %v559 = vld [vmem:[#allocation5 + $0x68] sm:$0xff]
        %v560 = vld [vmem:[#allocation5 + $0x70] sm:$0xff]
        %v561 = vld [vmem:[#allocation5 + $0x78] sm:$0xff]
        %v562 = vld [vmem:[#allocation5 + $0x80] sm:$0xff]
        %v563 = vld [vmem:[#allocation5 + $0x88] sm:$0xff]
        %v564 = vld [vmem:[#allocation5 + $0x90] sm:$0xff]
        %v565 = vld [vmem:[#allocation5 + $0x98] sm:$0xff]
        %v566 = vld [vmem:[#allocation5 + $0xa0] sm:$0xff]
        %v567 = vld [vmem:[#allocation5 + $0xa8] sm:$0xff]
        %v568 = vld [vmem:[#allocation5 + $0xb0] sm:$0xff]
        %v569 = vld [vmem:[#allocation5 + $0xb8] sm:$0xff]
        %v570 = vld [vmem:[#allocation5 + $0xc0] sm:$0xff]
        %v571 = vld [vmem:[#allocation5 + $0xc8] sm:$0xff]
        %v572 = vld [vmem:[#allocation5 + $0xd0] sm:$0xff]
        %v573 = vld [vmem:[#allocation5 + $0xd8] sm:$0xff]
        %v574 = vld [vmem:[#allocation5 + $0xe0] sm:$0xff]
        %v575 = vld [vmem:[#allocation5 + $0xe8] sm:$0xff]
        %v576 = vld [vmem:[#allocation5 + $0xf0] sm:$0xff]
        %v577 = vld [vmem:[#allocation5 + $0xf8] sm:$0xff]
        %v578 = vld [vmem:[%s6] sm:$0x3]
        %v580 = vlaneseq
        %v581 = vshrl.u32 %v580, 7
        %v582 = vsub.s32 0, %v581
        %v583 = vrot.slane %v578, %v582
        %v584 = vlaneseq
        %v585 = vshrl.u32 %v584, 7
        %v586 = vsub.s32 1, %v585
        %v587 = vrot.slane %v578, %v586
        %590 = vmatprep.subr.mxu0 %v577
        %591 = vmatpush1.msra.mxu0 %v576
        %592 = vmatprep.subr.mxu0 %v575
        %593 = vmatpush1.msra.mxu0 %v574
        %594 = vmatprep.subr.mxu0 %v573
        %595 = vmatpush1.msra.mxu0 %v572
        %596 = vmatprep.subr.mxu0 %v571
        %597 = vmatpush1.msra.mxu0 %v570
        %598 = vmatprep.subr.mxu0 %v569
        %599 = vmatpush1.msra.mxu0 %v568
        %600 = vmatprep.subr.mxu0 %v567
        %601 = vmatpush1.msra.mxu0 %v566
        %602 = vmatprep.subr.mxu0 %v565
        %603 = vmatpush1.msra.mxu0 %v564
        %604 = vmatprep.subr.mxu0 %v563
        %605 = vmatpush1.msra.mxu0 %v562
        %606 = vmatprep.subr.mxu0 %v561
        %607 = vmatpush1.msra.mxu0 %v560
        %608 = vmatprep.subr.mxu0 %v559
        %609 = vmatpush1.msra.mxu0 %v558
        %610 = vmatprep.subr.mxu0 %v557
        %611 = vmatpush1.msra.mxu0 %v556
        %612 = vmatprep.subr.mxu0 %v555
        %613 = vmatpush1.msra.mxu0 %v554
        %614 = vmatprep.subr.mxu0 %v553
        %615 = vmatpush1.msra.mxu0 %v552
        %616 = vmatprep.subr.mxu0 %v551
        %617 = vmatpush1.msra.mxu0 %v550
        %618 = vmatprep.subr.mxu0 %v549
        %619 = vmatpush1.msra.mxu0 %v548
        %620 = vmatprep.subr.mxu0 %v547
        %621 = vmatpush1.msra.mxu0 %v546
        %622 = vmatprep.subr.mxu0 0.0
        %623 = vmatpush2.msra.mxu0 0.0
        %624 = vmatprep.subr.mxu0 0.0
        %625 = vmatpush2.msra.mxu0 0.0
        %626 = vmatprep.subr.mxu0 0.0
        %627 = vmatpush2.msra.mxu0 0.0
        %628 = vmatprep.subr.mxu0 0.0
        %629 = vmatpush2.msra.mxu0 0.0
        %630 = vmatprep.subr.mxu0 0.0
        %631 = vmatpush2.msra.mxu0 0.0
        %632 = vmatprep.subr.mxu0 0.0
        %633 = vmatpush2.msra.mxu0 0.0
        %634 = vmatprep.subr.mxu0 0.0
        %635 = vmatpush2.msra.mxu0 0.0
        %636 = vmatprep.subr.mxu0 0.0
        %637 = vmatpush2.msra.mxu0 0.0
        %638 = vmatprep.subr.mxu0 0.0
        %639 = vmatpush2.msra.mxu0 0.0
        %640 = vmatprep.subr.mxu0 0.0
        %641 = vmatpush2.msra.mxu0 0.0
        %642 = vmatprep.subr.mxu0 0.0
        %643 = vmatpush2.msra.mxu0 0.0
        %644 = vmatprep.subr.mxu0 0.0
        %645 = vmatpush2.msra.mxu0 0.0
        %646 = vmatprep.subr.mxu0 0.0
        %647 = vmatpush2.msra.mxu0 0.0
        %648 = vmatprep.subr.mxu0 0.0
        %649 = vmatpush2.msra.mxu0 0.0
        %650 = vmatprep.subr.mxu0 0.0
        %651 = vmatpush2.msra.mxu0 0.0
        %652 = vmatprep.subr.mxu0 0.0
        %653 = vmatpush2.msra.mxu0 0.0
        %654 = vmatprep.mubr.f32.mxu0 0.0
        %655 = vmatmul.mubr.f32.gmra.mxu0 %v545
        %v656 = vpop.f32.mrf.mxu0
        %v657 = vadd.f32 %v583, %v656
        %v658 = vpop.f32.mrf.mxu0
        %v659 = vadd.f32 %v587, %v658
        %660 = vdwg.mxu0
        %v661 = vmax.f32 %v657, 0.0
        %v662 = vmax.f32 %v659, 0.0
        %v663 = vld [vmem:[#allocation7] sm:$0xff]
        %v664 = vld [vmem:[#allocation7 + $0x8] sm:$0xff]
        %v665 = vld [vmem:[#allocation7 + $0x10] sm:$0xff]
        %v666 = vld [vmem:[#allocation7 + $0x18] sm:$0xff]
        %v667 = vld [vmem:[#allocation7 + $0x20] sm:$0xff]
        %v668 = vld [vmem:[#allocation7 + $0x28] sm:$0xff]
        %v669 = vld [vmem:[#allocation7 + $0x30] sm:$0xff]
        %v670 = vld [vmem:[#allocation7 + $0x38] sm:$0xff]
        %v671 = vld [vmem:[#allocation7 + $0x40] sm:$0xff]
        %v672 = vld [vmem:[#allocation7 + $0x48] sm:$0xff]
        %v673 = vld [vmem:[#allocation7 + $0x50] sm:$0xff]
        %v674 = vld [vmem:[#allocation7 + $0x58] sm:$0xff]
        %v675 = vld [vmem:[#allocation7 + $0x60] sm:$0xff]
        %v676 = vld [vmem:[#allocation7 + $0x68] sm:$0xff]
        %v677 = vld [vmem:[#allocation7 + $0x70] sm:$0xff]
        %v678 = vld [vmem:[#allocation7 + $0x78] sm:$0xff]
        %v679 = vld [vmem:[#allocation7 + $0x80] sm:$0xff]
        %v680 = vld [vmem:[#allocation7 + $0x88] sm:$0xff]
        %v681 = vld [vmem:[#allocation7 + $0x90] sm:$0xff]
        %v682 = vld [vmem:[#allocation7 + $0x98] sm:$0xff]
        %v683 = vld [vmem:[#allocation7 + $0xa0] sm:$0xff]
        %v684 = vld [vmem:[#allocation7 + $0xa8] sm:$0xff]
        %v685 = vld [vmem:[#allocation7 + $0xb0] sm:$0xff]
        %v686 = vld [vmem:[#allocation7 + $0xb8] sm:$0xff]
        %v687 = vld [vmem:[#allocation7 + $0xc0] sm:$0xff]
        %v688 = vld [vmem:[#allocation7 + $0xc8] sm:$0xff]
        %v689 = vld [vmem:[#allocation7 + $0xd0] sm:$0xff]
        %v690 = vld [vmem:[#allocation7 + $0xd8] sm:$0xff]
        %v691 = vld [vmem:[#allocation7 + $0xe0] sm:$0xff]
        %v692 = vld [vmem:[#allocation7 + $0xe8] sm:$0xff]
        %v693 = vld [vmem:[#allocation7 + $0xf0] sm:$0xff]
        %v694 = vld [vmem:[#allocation7 + $0xf8] sm:$0xff]
        %v695 = vld [vmem:[#allocation7 + $0x100] sm:$0xff]
        %v696 = vld [vmem:[#allocation7 + $0x108] sm:$0xff]
        %v697 = vld [vmem:[#allocation7 + $0x110] sm:$0xff]
        %v698 = vld [vmem:[#allocation7 + $0x118] sm:$0xff]
        %v699 = vld [vmem:[#allocation7 + $0x120] sm:$0xff]
        %v700 = vld [vmem:[#allocation7 + $0x128] sm:$0xff]
        %v701 = vld [vmem:[#allocation7 + $0x130] sm:$0xff]
        %v702 = vld [vmem:[#allocation7 + $0x138] sm:$0xff]
        %v703 = vld [vmem:[#allocation7 + $0x140] sm:$0xff]
        %v704 = vld [vmem:[#allocation7 + $0x148] sm:$0xff]
        %v705 = vld [vmem:[#allocation7 + $0x150] sm:$0xff]
        %v706 = vld [vmem:[#allocation7 + $0x158] sm:$0xff]
        %v707 = vld [vmem:[#allocation7 + $0x160] sm:$0xff]
        %v708 = vld [vmem:[#allocation7 + $0x168] sm:$0xff]
        %v709 = vld [vmem:[#allocation7 + $0x170] sm:$0xff]
        %v710 = vld [vmem:[#allocation7 + $0x178] sm:$0xff]
        %v711 = vld [vmem:[#allocation7 + $0x180] sm:$0xff]
        %v712 = vld [vmem:[#allocation7 + $0x188] sm:$0xff]
        %v713 = vld [vmem:[#allocation7 + $0x190] sm:$0xff]
        %v714 = vld [vmem:[#allocation7 + $0x198] sm:$0xff]
        %v715 = vld [vmem:[#allocation7 + $0x1a0] sm:$0xff]
        %v716 = vld [vmem:[#allocation7 + $0x1a8] sm:$0xff]
        %v717 = vld [vmem:[#allocation7 + $0x1b0] sm:$0xff]
        %v718 = vld [vmem:[#allocation7 + $0x1b8] sm:$0xff]
        %v719 = vld [vmem:[#allocation7 + $0x1c0] sm:$0xff]
        %v720 = vld [vmem:[#allocation7 + $0x1c8] sm:$0xff]
        %v721 = vld [vmem:[#allocation7 + $0x1d0] sm:$0xff]
        %v722 = vld [vmem:[#allocation7 + $0x1d8] sm:$0xff]
        %v723 = vld [vmem:[#allocation7 + $0x1e0] sm:$0xff]
        %v724 = vld [vmem:[#allocation7 + $0x1e8] sm:$0xff]
        %v725 = vld [vmem:[#allocation7 + $0x1f0] sm:$0xff]
        %v726 = vld [vmem:[#allocation7 + $0x1f8] sm:$0xff]
        %v727 = vld [vmem:[#allocation7 + $0x200] sm:$0xff]
        %v728 = vld [vmem:[#allocation7 + $0x208] sm:$0xff]
        %v729 = vld [vmem:[#allocation7 + $0x210] sm:$0xff]
        %v730 = vld [vmem:[#allocation7 + $0x218] sm:$0xff]
        %v731 = vld [vmem:[#allocation7 + $0x220] sm:$0xff]
        %v732 = vld [vmem:[#allocation7 + $0x228] sm:$0xff]
        %v733 = vld [vmem:[#allocation7 + $0x230] sm:$0xff]
        %v734 = vld [vmem:[#allocation7 + $0x238] sm:$0xff]
        %v735 = vld [vmem:[#allocation7 + $0x240] sm:$0xff]
        %v736 = vld [vmem:[#allocation7 + $0x248] sm:$0xff]
        %v737 = vld [vmem:[#allocation7 + $0x250] sm:$0xff]
        %v738 = vld [vmem:[#allocation7 + $0x258] sm:$0xff]
        %v739 = vld [vmem:[#allocation7 + $0x260] sm:$0xff]
        %v740 = vld [vmem:[#allocation7 + $0x268] sm:$0xff]
        %v741 = vld [vmem:[#allocation7 + $0x270] sm:$0xff]
        %v742 = vld [vmem:[#allocation7 + $0x278] sm:$0xff]
        %v743 = vld [vmem:[#allocation7 + $0x280] sm:$0xff]
        %v744 = vld [vmem:[#allocation7 + $0x288] sm:$0xff]
        %v745 = vld [vmem:[#allocation7 + $0x290] sm:$0xff]
        %v746 = vld [vmem:[#allocation7 + $0x298] sm:$0xff]
        %v747 = vld [vmem:[#allocation7 + $0x2a0] sm:$0xff]
        %v748 = vld [vmem:[#allocation7 + $0x2a8] sm:$0xff]
        %v749 = vld [vmem:[#allocation7 + $0x2b0] sm:$0xff]
        %v750 = vld [vmem:[#allocation7 + $0x2b8] sm:$0xff]
        %v751 = vld [vmem:[#allocation7 + $0x2c0] sm:$0xff]
        %v752 = vld [vmem:[#allocation7 + $0x2c8] sm:$0xff]
        %v753 = vld [vmem:[#allocation7 + $0x2d0] sm:$0xff]
        %v754 = vld [vmem:[#allocation7 + $0x2d8] sm:$0xff]
        %v755 = vld [vmem:[#allocation7 + $0x2e0] sm:$0xff]
        %v756 = vld [vmem:[#allocation7 + $0x2e8] sm:$0xff]
        %v757 = vld [vmem:[#allocation7 + $0x2f0] sm:$0xff]
        %v758 = vld [vmem:[#allocation7 + $0x2f8] sm:$0xff]
        %v759 = vld [vmem:[#allocation7 + $0x300] sm:$0xff]
        %v760 = vld [vmem:[#allocation7 + $0x308] sm:$0xff]
        %v761 = vld [vmem:[#allocation7 + $0x310] sm:$0xff]
        %v762 = vld [vmem:[#allocation7 + $0x318] sm:$0xff]
        %v763 = vld [vmem:[#allocation7 + $0x320] sm:$0xff]
        %v764 = vld [vmem:[#allocation7 + $0x328] sm:$0xff]
        %v765 = vld [vmem:[#allocation7 + $0x330] sm:$0xff]
        %v766 = vld [vmem:[#allocation7 + $0x338] sm:$0xff]
        %v767 = vld [vmem:[#allocation7 + $0x340] sm:$0xff]
        %v768 = vld [vmem:[#allocation7 + $0x348] sm:$0xff]
        %v769 = vld [vmem:[#allocation7 + $0x350] sm:$0xff]
        %v770 = vld [vmem:[#allocation7 + $0x358] sm:$0xff]
        %v771 = vld [vmem:[#allocation7 + $0x360] sm:$0xff]
        %v772 = vld [vmem:[#allocation7 + $0x368] sm:$0xff]
        %v773 = vld [vmem:[#allocation7 + $0x370] sm:$0xff]
        %v774 = vld [vmem:[#allocation7 + $0x378] sm:$0xff]
        %v775 = vld [vmem:[#allocation7 + $0x380] sm:$0xff]
        %v776 = vld [vmem:[#allocation7 + $0x388] sm:$0xff]
        %v777 = vld [vmem:[#allocation7 + $0x390] sm:$0xff]
        %v778 = vld [vmem:[#allocation7 + $0x398] sm:$0xff]
        %v779 = vld [vmem:[#allocation7 + $0x3a0] sm:$0xff]
        %v780 = vld [vmem:[#allocation7 + $0x3a8] sm:$0xff]
        %v781 = vld [vmem:[#allocation7 + $0x3b0] sm:$0xff]
        %v782 = vld [vmem:[#allocation7 + $0x3b8] sm:$0xff]
        %v783 = vld [vmem:[#allocation7 + $0x3c0] sm:$0xff]
        %v784 = vld [vmem:[#allocation7 + $0x3c8] sm:$0xff]
        %v785 = vld [vmem:[#allocation7 + $0x3d0] sm:$0xff]
        %v786 = vld [vmem:[#allocation7 + $0x3d8] sm:$0xff]
        %v787 = vld [vmem:[#allocation7 + $0x3e0] sm:$0xff]
        %v788 = vld [vmem:[#allocation7 + $0x3e8] sm:$0xff]
        %v789 = vld [vmem:[#allocation7 + $0x3f0] sm:$0xff]
        %v790 = vld [vmem:[#allocation7 + $0x3f8] sm:$0xff]
        %v791 = vld [vmem:[#allocation7 + $0x400] sm:$0xff]
        %v792 = vld [vmem:[#allocation7 + $0x408] sm:$0xff]
        %v793 = vld [vmem:[#allocation7 + $0x410] sm:$0xff]
        %v794 = vld [vmem:[#allocation7 + $0x418] sm:$0xff]
        %v795 = vld [vmem:[#allocation7 + $0x420] sm:$0xff]
        %v796 = vld [vmem:[#allocation7 + $0x428] sm:$0xff]
        %v797 = vld [vmem:[#allocation7 + $0x430] sm:$0xff]
        %v798 = vld [vmem:[#allocation7 + $0x438] sm:$0xff]
        %v799 = vld [vmem:[#allocation7 + $0x440] sm:$0xff]
        %v800 = vld [vmem:[#allocation7 + $0x448] sm:$0xff]
        %v801 = vld [vmem:[#allocation7 + $0x450] sm:$0xff]
        %v802 = vld [vmem:[#allocation7 + $0x458] sm:$0xff]
        %v803 = vld [vmem:[#allocation7 + $0x460] sm:$0xff]
        %v804 = vld [vmem:[#allocation7 + $0x468] sm:$0xff]
        %v805 = vld [vmem:[#allocation7 + $0x470] sm:$0xff]
        %v806 = vld [vmem:[#allocation7 + $0x478] sm:$0xff]
        %v807 = vld [vmem:[#allocation7 + $0x480] sm:$0xff]
        %v808 = vld [vmem:[#allocation7 + $0x488] sm:$0xff]
        %v809 = vld [vmem:[#allocation7 + $0x490] sm:$0xff]
        %v810 = vld [vmem:[#allocation7 + $0x498] sm:$0xff]
        %v811 = vld [vmem:[#allocation7 + $0x4a0] sm:$0xff]
        %v812 = vld [vmem:[#allocation7 + $0x4a8] sm:$0xff]
        %v813 = vld [vmem:[#allocation7 + $0x4b0] sm:$0xff]
        %v814 = vld [vmem:[#allocation7 + $0x4b8] sm:$0xff]
        %v815 = vld [vmem:[#allocation7 + $0x4c0] sm:$0xff]
        %v816 = vld [vmem:[#allocation7 + $0x4c8] sm:$0xff]
        %v817 = vld [vmem:[#allocation7 + $0x4d0] sm:$0xff]
        %v818 = vld [vmem:[#allocation7 + $0x4d8] sm:$0xff]
        %v819 = vld [vmem:[#allocation7 + $0x4e0] sm:$0xff]
        %v820 = vld [vmem:[#allocation7 + $0x4e8] sm:$0xff]
        %v821 = vld [vmem:[#allocation7 + $0x4f0] sm:$0xff]
        %v822 = vld [vmem:[#allocation7 + $0x4f8] sm:$0xff]
        %v823 = vld [vmem:[#allocation7 + $0x500] sm:$0xff]
        %v824 = vld [vmem:[#allocation7 + $0x508] sm:$0xff]
        %v825 = vld [vmem:[#allocation7 + $0x510] sm:$0xff]
        %v826 = vld [vmem:[#allocation7 + $0x518] sm:$0xff]
        %v827 = vld [vmem:[#allocation7 + $0x520] sm:$0xff]
        %v828 = vld [vmem:[#allocation7 + $0x528] sm:$0xff]
        %v829 = vld [vmem:[#allocation7 + $0x530] sm:$0xff]
        %v830 = vld [vmem:[#allocation7 + $0x538] sm:$0xff]
        %v831 = vld [vmem:[#allocation7 + $0x540] sm:$0xff]
        %v832 = vld [vmem:[#allocation7 + $0x548] sm:$0xff]
        %v833 = vld [vmem:[#allocation7 + $0x550] sm:$0xff]
        %v834 = vld [vmem:[#allocation7 + $0x558] sm:$0xff]
        %v835 = vld [vmem:[#allocation7 + $0x560] sm:$0xff]
        %v836 = vld [vmem:[#allocation7 + $0x568] sm:$0xff]
        %v837 = vld [vmem:[#allocation7 + $0x570] sm:$0xff]
        %v838 = vld [vmem:[#allocation7 + $0x578] sm:$0xff]
        %v839 = vld [vmem:[#allocation7 + $0x580] sm:$0xff]
        %v840 = vld [vmem:[#allocation7 + $0x588] sm:$0xff]
        %v841 = vld [vmem:[#allocation7 + $0x590] sm:$0xff]
        %v842 = vld [vmem:[#allocation7 + $0x598] sm:$0xff]
        %v843 = vld [vmem:[#allocation7 + $0x5a0] sm:$0xff]
        %v844 = vld [vmem:[#allocation7 + $0x5a8] sm:$0xff]
        %v845 = vld [vmem:[#allocation7 + $0x5b0] sm:$0xff]
        %v846 = vld [vmem:[#allocation7 + $0x5b8] sm:$0xff]
        %v847 = vld [vmem:[#allocation7 + $0x5c0] sm:$0xff]
        %v848 = vld [vmem:[#allocation7 + $0x5c8] sm:$0xff]
        %v849 = vld [vmem:[#allocation7 + $0x5d0] sm:$0xff]
        %v850 = vld [vmem:[#allocation7 + $0x5d8] sm:$0xff]
        %v851 = vld [vmem:[#allocation7 + $0x5e0] sm:$0xff]
        %v852 = vld [vmem:[#allocation7 + $0x5e8] sm:$0xff]
        %v853 = vld [vmem:[#allocation7 + $0x5f0] sm:$0xff]
        %v854 = vld [vmem:[#allocation7 + $0x5f8] sm:$0xff]
        %v855 = vld [vmem:[#allocation7 + $0x600] sm:$0xff]
        %v856 = vld [vmem:[#allocation7 + $0x608] sm:$0xff]
        %v857 = vld [vmem:[#allocation7 + $0x610] sm:$0xff]
        %v858 = vld [vmem:[#allocation7 + $0x618] sm:$0xff]
        %v859 = vld [vmem:[#allocation7 + $0x620] sm:$0xff]
        %v860 = vld [vmem:[#allocation7 + $0x628] sm:$0xff]
        %v861 = vld [vmem:[#allocation7 + $0x630] sm:$0xff]
        %v862 = vld [vmem:[#allocation7 + $0x638] sm:$0xff]
        %v863 = vld [vmem:[#allocation7 + $0x640] sm:$0xff]
        %v864 = vld [vmem:[#allocation7 + $0x648] sm:$0xff]
        %v865 = vld [vmem:[#allocation7 + $0x650] sm:$0xff]
        %v866 = vld [vmem:[#allocation7 + $0x658] sm:$0xff]
        %v867 = vld [vmem:[#allocation7 + $0x660] sm:$0xff]
        %v868 = vld [vmem:[#allocation7 + $0x668] sm:$0xff]
        %v869 = vld [vmem:[#allocation7 + $0x670] sm:$0xff]
        %v870 = vld [vmem:[#allocation7 + $0x678] sm:$0xff]
        %v871 = vld [vmem:[#allocation7 + $0x680] sm:$0xff]
        %v872 = vld [vmem:[#allocation7 + $0x688] sm:$0xff]
        %v873 = vld [vmem:[#allocation7 + $0x690] sm:$0xff]
        %v874 = vld [vmem:[#allocation7 + $0x698] sm:$0xff]
        %v875 = vld [vmem:[#allocation7 + $0x6a0] sm:$0xff]
        %v876 = vld [vmem:[#allocation7 + $0x6a8] sm:$0xff]
        %v877 = vld [vmem:[#allocation7 + $0x6b0] sm:$0xff]
        %v878 = vld [vmem:[#allocation7 + $0x6b8] sm:$0xff]
        %v879 = vld [vmem:[#allocation7 + $0x6c0] sm:$0xff]
        %v880 = vld [vmem:[#allocation7 + $0x6c8] sm:$0xff]
        %v881 = vld [vmem:[#allocation7 + $0x6d0] sm:$0xff]
        %v882 = vld [vmem:[#allocation7 + $0x6d8] sm:$0xff]
        %v883 = vld [vmem:[#allocation7 + $0x6e0] sm:$0xff]
        %v884 = vld [vmem:[#allocation7 + $0x6e8] sm:$0xff]
        %v885 = vld [vmem:[#allocation7 + $0x6f0] sm:$0xff]
        %v886 = vld [vmem:[#allocation7 + $0x6f8] sm:$0xff]
        %v887 = vld [vmem:[%s8] sm:$0xff]
        %v889 = vlaneseq
        %v890 = vshrl.u32 %v889, 7
        %v891 = vsub.s32 0, %v890
        %v892 = vrot.slane %v887, %v891
        %v893 = vlaneseq
        %v894 = vshrl.u32 %v893, 7
        %v895 = vsub.s32 1, %v894
        %v896 = vrot.slane %v887, %v895
        %v897 = vlaneseq
        %v898 = vshrl.u32 %v897, 7
        %v899 = vsub.s32 2, %v898
        %v900 = vrot.slane %v887, %v899
        %v901 = vlaneseq
        %v902 = vshrl.u32 %v901, 7
        %v903 = vsub.s32 3, %v902
        %v904 = vrot.slane %v887, %v903
        %v905 = vlaneseq
        %v906 = vshrl.u32 %v905, 7
        %v907 = vsub.s32 4, %v906
        %v908 = vrot.slane %v887, %v907
        %v909 = vlaneseq
        %v910 = vshrl.u32 %v909, 7
        %v911 = vsub.s32 5, %v910
        %v912 = vrot.slane %v887, %v911
        %v913 = vlaneseq
        %v914 = vshrl.u32 %v913, 7
        %v915 = vsub.s32 6, %v914
        %v916 = vrot.slane %v887, %v915
        %924 = vmatprep.subr.mxu0 %v769
        %925 = vmatpush1.msra.mxu0 %v768
        %926 = vmatprep.subr.mxu0 %v762
        %927 = vmatpush1.msra.mxu0 %v761
        %928 = vmatprep.subr.mxu0 %v755
        %929 = vmatpush1.msra.mxu0 %v754
        %930 = vmatprep.subr.mxu0 %v748
        %931 = vmatpush1.msra.mxu0 %v747
        %932 = vmatprep.subr.mxu0 %v741
        %933 = vmatpush1.msra.mxu0 %v740
        %934 = vmatprep.subr.mxu0 %v734
        %935 = vmatpush1.msra.mxu0 %v733
        %936 = vmatprep.subr.mxu0 %v727
        %937 = vmatpush1.msra.mxu0 %v726
        %938 = vmatprep.subr.mxu0 %v720
        %939 = vmatpush1.msra.mxu0 %v719
        %940 = vmatprep.subr.mxu0 %v713
        %941 = vmatpush1.msra.mxu0 %v712
        %942 = vmatprep.subr.mxu0 %v706
        %943 = vmatpush1.msra.mxu0 %v705
        %944 = vmatprep.subr.mxu0 %v699
        %945 = vmatpush1.msra.mxu0 %v698
        %946 = vmatprep.subr.mxu0 %v692
        %947 = vmatpush1.msra.mxu0 %v691
        %948 = vmatprep.subr.mxu0 %v685
        %949 = vmatpush1.msra.mxu0 %v684
        %950 = vmatprep.subr.mxu0 %v678
        %951 = vmatpush1.msra.mxu0 %v677
        %952 = vmatprep.subr.mxu0 %v671
        %953 = vmatpush1.msra.mxu0 %v670
        %954 = vmatprep.subr.mxu0 %v664
        %955 = vmatpush1.msra.mxu0 %v663
        %956 = vmatprep.subr.mxu0 %v881
        %957 = vmatpush2.msra.mxu0 %v880
        %958 = vmatprep.subr.mxu0 %v874
        %959 = vmatpush2.msra.mxu0 %v873
        %960 = vmatprep.subr.mxu0 %v867
        %961 = vmatpush2.msra.mxu0 %v866
        %962 = vmatprep.subr.mxu0 %v860
        %963 = vmatpush2.msra.mxu0 %v859
        %964 = vmatprep.subr.mxu0 %v853
        %965 = vmatpush2.msra.mxu0 %v852
        %966 = vmatprep.subr.mxu0 %v846
        %967 = vmatpush2.msra.mxu0 %v845
        %968 = vmatprep.subr.mxu0 %v839
        %969 = vmatpush2.msra.mxu0 %v838
        %970 = vmatprep.subr.mxu0 %v832
        %971 = vmatpush2.msra.mxu0 %v831
        %972 = vmatprep.subr.mxu0 %v825
        %973 = vmatpush2.msra.mxu0 %v824
        %974 = vmatprep.subr.mxu0 %v818
        %975 = vmatpush2.msra.mxu0 %v817
        %976 = vmatprep.subr.mxu0 %v811
        %977 = vmatpush2.msra.mxu0 %v810
        %978 = vmatprep.subr.mxu0 %v804
        %979 = vmatpush2.msra.mxu0 %v803
        %980 = vmatprep.subr.mxu0 %v797
        %981 = vmatpush2.msra.mxu0 %v796
        %982 = vmatprep.subr.mxu0 %v790
        %983 = vmatpush2.msra.mxu0 %v789
        %984 = vmatprep.subr.mxu0 %v783
        %985 = vmatpush2.msra.mxu0 %v782
        %986 = vmatprep.subr.mxu0 %v776
        %987 = vmatpush2.msra.mxu0 %v775
        %988 = vmatprep.mubr.f32.mxu0 %v662
        %989 = vmatmul.mubr.f32.gmra.mxu0 %v661
        %v990 = vpop.f32.mrf.mxu0
        %v991 = vadd.f32 %v892, %v990
        %v992 = vpop.f32.mrf.mxu0
        %v993 = vadd.f32 %v896, %v992
        %994 = vdwg.mxu0
        %995 = vmatprep.subr.mxu0 %v771
        %996 = vmatpush1.msra.mxu0 %v770
        %997 = vmatprep.subr.mxu0 %v764
        %998 = vmatpush1.msra.mxu0 %v763
        %999 = vmatprep.subr.mxu0 %v757
        %1000 = vmatpush1.msra.mxu0 %v756
        %1001 = vmatprep.subr.mxu0 %v750
        %1002 = vmatpush1.msra.mxu0 %v749
        %1003 = vmatprep.subr.mxu0 %v743
        %1004 = vmatpush1.msra.mxu0 %v742
        %1005 = vmatprep.subr.mxu0 %v736
        %1006 = vmatpush1.msra.mxu0 %v735
        %1007 = vmatprep.subr.mxu0 %v729
        %1008 = vmatpush1.msra.mxu0 %v728
        %1009 = vmatprep.subr.mxu0 %v722
        %1010 = vmatpush1.msra.mxu0 %v721
        %1011 = vmatprep.subr.mxu0 %v715
        %1012 = vmatpush1.msra.mxu0 %v714
        %1013 = vmatprep.subr.mxu0 %v708
        %1014 = vmatpush1.msra.mxu0 %v707
        %1015 = vmatprep.subr.mxu0 %v701
        %1016 = vmatpush1.msra.mxu0 %v700
        %1017 = vmatprep.subr.mxu0 %v694
        %1018 = vmatpush1.msra.mxu0 %v693
        %1019 = vmatprep.subr.mxu0 %v687
        %1020 = vmatpush1.msra.mxu0 %v686
        %1021 = vmatprep.subr.mxu0 %v680
        %1022 = vmatpush1.msra.mxu0 %v679
        %1023 = vmatprep.subr.mxu0 %v673
        %1024 = vmatpush1.msra.mxu0 %v672
        %1025 = vmatprep.subr.mxu0 %v666
        %1026 = vmatpush1.msra.mxu0 %v665
        %1027 = vmatprep.subr.mxu0 %v883
        %1028 = vmatpush2.msra.mxu0 %v882
        %1029 = vmatprep.subr.mxu0 %v876
        %1030 = vmatpush2.msra.mxu0 %v875
        %1031 = vmatprep.subr.mxu0 %v869
        %1032 = vmatpush2.msra.mxu0 %v868
        %1033 = vmatprep.subr.mxu0 %v862
        %1034 = vmatpush2.msra.mxu0 %v861
        %1035 = vmatprep.subr.mxu0 %v855
        %1036 = vmatpush2.msra.mxu0 %v854
        %1037 = vmatprep.subr.mxu0 %v848
        %1038 = vmatpush2.msra.mxu0 %v847
        %1039 = vmatprep.subr.mxu0 %v841
        %1040 = vmatpush2.msra.mxu0 %v840
        %1041 = vmatprep.subr.mxu0 %v834
        %1042 = vmatpush2.msra.mxu0 %v833
        %1043 = vmatprep.subr.mxu0 %v827
        %1044 = vmatpush2.msra.mxu0 %v826
        %1045 = vmatprep.subr.mxu0 %v820
        %1046 = vmatpush2.msra.mxu0 %v819
        %1047 = vmatprep.subr.mxu0 %v813
        %1048 = vmatpush2.msra.mxu0 %v812
        %1049 = vmatprep.subr.mxu0 %v806
        %1050 = vmatpush2.msra.mxu0 %v805
        %1051 = vmatprep.subr.mxu0 %v799
        %1052 = vmatpush2.msra.mxu0 %v798
        %1053 = vmatprep.subr.mxu0 %v792
        %1054 = vmatpush2.msra.mxu0 %v791
        %1055 = vmatprep.subr.mxu0 %v785
        %1056 = vmatpush2.msra.mxu0 %v784
        %1057 = vmatprep.subr.mxu0 %v778
        %1058 = vmatpush2.msra.mxu0 %v777
        %1059 = vmatprep.mubr.f32.mxu0 %v662
        %1060 = vmatmul.mubr.f32.gmra.mxu0 %v661
        %v1061 = vpop.f32.mrf.mxu0
        %v1062 = vadd.f32 %v900, %v1061
        %v1063 = vpop.f32.mrf.mxu0
        %v1064 = vadd.f32 %v904, %v1063
        %1065 = vdwg.mxu0
        %1066 = vmatprep.subr.mxu0 %v773
        %1067 = vmatpush1.msra.mxu0 %v772
        %1068 = vmatprep.subr.mxu0 %v766
        %1069 = vmatpush1.msra.mxu0 %v765
        %1070 = vmatprep.subr.mxu0 %v759
        %1071 = vmatpush1.msra.mxu0 %v758
        %1072 = vmatprep.subr.mxu0 %v752
        %1073 = vmatpush1.msra.mxu0 %v751
        %1074 = vmatprep.subr.mxu0 %v745
        %1075 = vmatpush1.msra.mxu0 %v744
        %1076 = vmatprep.subr.mxu0 %v738
        %1077 = vmatpush1.msra.mxu0 %v737
        %1078 = vmatprep.subr.mxu0 %v731
        %1079 = vmatpush1.msra.mxu0 %v730
        %1080 = vmatprep.subr.mxu0 %v724
        %1081 = vmatpush1.msra.mxu0 %v723
        %1082 = vmatprep.subr.mxu0 %v717
        %1083 = vmatpush1.msra.mxu0 %v716
        %1084 = vmatprep.subr.mxu0 %v710
        %1085 = vmatpush1.msra.mxu0 %v709
        %1086 = vmatprep.subr.mxu0 %v703
        %1087 = vmatpush1.msra.mxu0 %v702
        %1088 = vmatprep.subr.mxu0 %v696
        %1089 = vmatpush1.msra.mxu0 %v695
        %1090 = vmatprep.subr.mxu0 %v689
        %1091 = vmatpush1.msra.mxu0 %v688
        %1092 = vmatprep.subr.mxu0 %v682
        %1093 = vmatpush1.msra.mxu0 %v681
        %1094 = vmatprep.subr.mxu0 %v675
        %1095 = vmatpush1.msra.mxu0 %v674
        %1096 = vmatprep.subr.mxu0 %v668
        %1097 = vmatpush1.msra.mxu0 %v667
        %1098 = vmatprep.subr.mxu0 %v885
        %1099 = vmatpush2.msra.mxu0 %v884
        %1100 = vmatprep.subr.mxu0 %v878
        %1101 = vmatpush2.msra.mxu0 %v877
        %1102 = vmatprep.subr.mxu0 %v871
        %1103 = vmatpush2.msra.mxu0 %v870
        %1104 = vmatprep.subr.mxu0 %v864
        %1105 = vmatpush2.msra.mxu0 %v863
        %1106 = vmatprep.subr.mxu0 %v857
        %1107 = vmatpush2.msra.mxu0 %v856
        %1108 = vmatprep.subr.mxu0 %v850
        %1109 = vmatpush2.msra.mxu0 %v849
        %1110 = vmatprep.subr.mxu0 %v843
        %1111 = vmatpush2.msra.mxu0 %v842
        %1112 = vmatprep.subr.mxu0 %v836
        %1113 = vmatpush2.msra.mxu0 %v835
        %1114 = vmatprep.subr.mxu0 %v829
        %1115 = vmatpush2.msra.mxu0 %v828
        %1116 = vmatprep.subr.mxu0 %v822
        %1117 = vmatpush2.msra.mxu0 %v821
        %1118 = vmatprep.subr.mxu0 %v815
        %1119 = vmatpush2.msra.mxu0 %v814
        %1120 = vmatprep.subr.mxu0 %v808
        %1121 = vmatpush2.msra.mxu0 %v807
        %1122 = vmatprep.subr.mxu0 %v801
        %1123 = vmatpush2.msra.mxu0 %v800
        %1124 = vmatprep.subr.mxu0 %v794
        %1125 = vmatpush2.msra.mxu0 %v793
        %1126 = vmatprep.subr.mxu0 %v787
        %1127 = vmatpush2.msra.mxu0 %v786
        %1128 = vmatprep.subr.mxu0 %v780
        %1129 = vmatpush2.msra.mxu0 %v779
        %1130 = vmatprep.mubr.f32.mxu0 %v662
        %1131 = vmatmul.mubr.f32.gmra.mxu0 %v661
        %v1132 = vpop.f32.mrf.mxu0
        %v1133 = vadd.f32 %v908, %v1132
        %v1134 = vpop.f32.mrf.mxu0
        %v1135 = vadd.f32 %v912, %v1134
        %1136 = vdwg.mxu0
        %1137 = vmatprep.subr.mxu0 0.0
        %1138 = vmatpush1.msra.mxu0 %v774
        %1139 = vmatprep.subr.mxu0 0.0
        %1140 = vmatpush1.msra.mxu0 %v767
        %1141 = vmatprep.subr.mxu0 0.0
        %1142 = vmatpush1.msra.mxu0 %v760
        %1143 = vmatprep.subr.mxu0 0.0
        %1144 = vmatpush1.msra.mxu0 %v753
        %1145 = vmatprep.subr.mxu0 0.0
        %1146 = vmatpush1.msra.mxu0 %v746
        %1147 = vmatprep.subr.mxu0 0.0
        %1148 = vmatpush1.msra.mxu0 %v739
        %1149 = vmatprep.subr.mxu0 0.0
        %1150 = vmatpush1.msra.mxu0 %v732
        %1151 = vmatprep.subr.mxu0 0.0
        %1152 = vmatpush1.msra.mxu0 %v725
        %1153 = vmatprep.subr.mxu0 0.0
        %1154 = vmatpush1.msra.mxu0 %v718
        %1155 = vmatprep.subr.mxu0 0.0
        %1156 = vmatpush1.msra.mxu0 %v711
        %1157 = vmatprep.subr.mxu0 0.0
        %1158 = vmatpush1.msra.mxu0 %v704
        %1159 = vmatprep.subr.mxu0 0.0
        %1160 = vmatpush1.msra.mxu0 %v697
        %1161 = vmatprep.subr.mxu0 0.0
        %1162 = vmatpush1.msra.mxu0 %v690
        %1163 = vmatprep.subr.mxu0 0.0
        %1164 = vmatpush1.msra.mxu0 %v683
        %1165 = vmatprep.subr.mxu0 0.0
        %1166 = vmatpush1.msra.mxu0 %v676
        %1167 = vmatprep.subr.mxu0 0.0
        %1168 = vmatpush1.msra.mxu0 %v669
        %1169 = vmatprep.subr.mxu0 0.0
        %1170 = vmatpush2.msra.mxu0 %v886
        %1171 = vmatprep.subr.mxu0 0.0
        %1172 = vmatpush2.msra.mxu0 %v879
        %1173 = vmatprep.subr.mxu0 0.0
        %1174 = vmatpush2.msra.mxu0 %v872
        %1175 = vmatprep.subr.mxu0 0.0
        %1176 = vmatpush2.msra.mxu0 %v865
        %1177 = vmatprep.subr.mxu0 0.0
        %1178 = vmatpush2.msra.mxu0 %v858
        %1179 = vmatprep.subr.mxu0 0.0
        %1180 = vmatpush2.msra.mxu0 %v851
        %1181 = vmatprep.subr.mxu0 0.0
        %1182 = vmatpush2.msra.mxu0 %v844
        %1183 = vmatprep.subr.mxu0 0.0
        %1184 = vmatpush2.msra.mxu0 %v837
        %1185 = vmatprep.subr.mxu0 0.0
        %1186 = vmatpush2.msra.mxu0 %v830
        %1187 = vmatprep.subr.mxu0 0.0
        %1188 = vmatpush2.msra.mxu0 %v823
        %1189 = vmatprep.subr.mxu0 0.0
        %1190 = vmatpush2.msra.mxu0 %v816
        %1191 = vmatprep.subr.mxu0 0.0
        %1192 = vmatpush2.msra.mxu0 %v809
        %1193 = vmatprep.subr.mxu0 0.0
        %1194 = vmatpush2.msra.mxu0 %v802
        %1195 = vmatprep.subr.mxu0 0.0
        %1196 = vmatpush2.msra.mxu0 %v795
        %1197 = vmatprep.subr.mxu0 0.0
        %1198 = vmatpush2.msra.mxu0 %v788
        %1199 = vmatprep.subr.mxu0 0.0
        %1200 = vmatpush2.msra.mxu0 %v781
        %1201 = vmatprep.mubr.f32.mxu0 %v662
        %1202 = vmatmul.mubr.f32.gmra.mxu0 %v661
        %v1203 = vpop.f32.mrf.mxu0
        %v1204 = vadd.f32 %v916, %v1203
        %v1205 = vpop.f32.mrf.mxu0
        %1206 = vdwg.mxu0
        %v1207 = vmul.f32 %v991, 0.5
        %v1208 = vmul.f32 %v993, 0.5
        %v1209 = vmul.f32 %v1062, 0.5
        %v1210 = vmul.f32 %v1064, 0.5
        %v1211 = vmul.f32 %v1133, 0.5
        %v1212 = vmul.f32 %v1135, 0.5
        %v1213 = vmul.f32 %v1204, 0.5
        %v1214 = vtanh.pop %v1207
        %v1215 = vtanh.pop %v1208
        %v1216 = vtanh.pop %v1209
        %v1217 = vtanh.pop %v1210
        %v1218 = vtanh.pop %v1211
        %v1219 = vtanh.pop %v1212
        %v1220 = vtanh.pop %v1213
        %v1221 = vadd.f32 %v1214, 1.0
        %v1222 = vadd.f32 %v1215, 1.0
        %v1223 = vadd.f32 %v1216, 1.0
        %v1224 = vadd.f32 %v1217, 1.0
        %v1225 = vadd.f32 %v1218, 1.0
        %v1226 = vadd.f32 %v1219, 1.0
        %v1227 = vadd.f32 %v1220, 1.0
        %v1228 = vmul.f32 %v1221, 0.5
        %v1229 = vmul.f32 %v1222, 0.5
        %v1230 = vmul.f32 %v1223, 0.5
        %v1231 = vmul.f32 %v1224, 0.5
        %v1232 = vmul.f32 %v1225, 0.5
        %v1233 = vmul.f32 %v1226, 0.5
        %v1234 = vmul.f32 %v1227, 0.5
        %1235 = vst [vmem:[%s367] sm:$0xff] %v1228
        %1236 = vst [vmem:[%s367 + $0x8] sm:$0xff] %v1229
        %1237 = vst [vmem:[%s367 + $0x10] sm:$0xff] %v1230
        %1238 = vst [vmem:[%s367 + $0x18] sm:$0xff] %v1231
        %1239 = vst [vmem:[%s367 + $0x20] sm:$0xff] %v1232
        %1240 = vst [vmem:[%s367 + $0x28] sm:$0xff] %v1233
        %1241 = vst [vmem:[%s367 + $0x30] sm:$0xff] %v1234
        %s1242 = sand.u32 %s227, 1
        %s1243 = scalar_lea.sflag [#allocation4], %s1242
        %s1244 = sand.u32 %s227, 1
        %s1245 = smul.addr %s1244, 56
        %s1246 = scalar_lea.vmem [#allocation8], %s1245
        // Predicated region
        $region69: #{tpu_custom_call.1} parent=55 // pred_check
          %p1247 = pneg %p237
        $region70: #{tpu_custom_call.1} parent=55 // pred_check_branch
          %1249 = sbr.rel (%p1247) target = $region72
        $region71: #{tpu_custom_call.1} parent=55 // pred_region
          %s1251 = ssub.s32 896, 896
          %1252 = vsyncadd %s1243, %s1251
          %s1253 = smul.addr %s25, 7
          %s1254 = smul.addr %s1253, 128
          %s1255 = scalar_lea.hbm %s9, %s1254
          %s1257 = sshll.u32 %s1246, 4
          %s1258 = int_to_ptr.vmem [resolvable:$true] %s1257
          %1260 = dma.vmem_to_hbm [thread:$0]  %s1258, 896, %s1255, %s1243
        $region72: #{tpu_custom_call.1} parent=55 // pred_fallthru
          _
      $region56: #{tpu_custom_call.1} parent=5 // pred_fallthru
        _
      %p1261 = scmp.le.s32.totalorder 2, %s20
      // Predicated region
      $region73: #{tpu_custom_call.1} parent=5 // pred_check
        %p1262 = pneg %p1261
      $region74: #{tpu_custom_call.1} parent=5 // pred_check_branch
        %1264 = sbr.rel (%p1262) target = $region76
      $region75: #{tpu_custom_call.1} parent=5 // pred_region
        %s1265 = ssub.s32 %s20, 2
        // Predicated region
        $region77: #{tpu_custom_call.1} parent=75 // pred_check
          %p1266 = pneg %p243
        $region78: #{tpu_custom_call.1} parent=75 // pred_check_branch
          %1268 = sbr.rel (%p1266) target = $region80
        $region79: #{tpu_custom_call.1} parent=75 // pred_region
          %s1269 = sand.u32 %s228, 1
          %s1270 = scalar_lea.sflag [#allocation4], %s1269
          %s1271 = sand.u32 %s228, 1
          %s1272 = smul.addr %s1271, 56
          %s1273 = scalar_lea.vmem [#allocation8], %s1272
          %1274 = dma.done %s1270, 896
        $region80: #{tpu_custom_call.1} parent=75 // pred_fallthru
          _
      $region76: #{tpu_custom_call.1} parent=5 // pred_fallthru
        _
    $region6: #{tpu_custom_call.1} parent=1 // loop_footer
      %s24 = sadd.s32 1, %s20
    $region7: #{tpu_custom_call.1} parent=1 // loop_footer_branch
      %19 = sbr.rel target = $region3
    $region8: #{tpu_custom_call.1} parent=1 // loop_exit
      _
    %1275 = vsyncpa [#allocation3], 1
    %s1276 = scalar_lea.sflag [#allocation3], 1
    %1277 = vsyncpa %s1276, 1
    %1278 = vsyncpa [#allocation6], 1
    %1279 = vsyncpa [#allocation4], 1
    %s1280 = scalar_lea.sflag [#allocation4], 1
    %1281 = vsyncpa %s1280, 1

</llo_original>
